<compile_context>
chip_gen: v7x
topology: tpu7x:2x2x1
jax: 0.10.0
libtpu: 0.0.40
codegen_flags: <defaults>
</compile_context>

<pallas_src>
import functools

import jax
import jax.numpy as jnp
from jax import lax
from jax.experimental import pallas as pl
from jax.experimental.pallas import tpu as pltpu


def _round_up(x, m):
    return ((x + m - 1) // m) * m


# --------------------------------------------------------------------------- #
# Kernel 1: row-wise softmax of the (padded) weight, computed once.
# --------------------------------------------------------------------------- #
def _softmax_rows_kernel(w_ref, o_ref):
    w = w_ref[...]
    w_max = jnp.max(w, axis=1, keepdims=True)
    w_exp = jnp.exp(w - w_max)
    # Runs once (off the hot loop), so use an exact divide for accuracy.
    o_ref[...] = w_exp / jnp.sum(w_exp, axis=1, keepdims=True)


def _softmax_rows(w):
    r, c = w.shape
    return pl.pallas_call(
        _softmax_rows_kernel,
        out_shape=jax.ShapeDtypeStruct((r, c), jnp.float32),
        grid=(1,),
        in_specs=[pl.BlockSpec((r, c), lambda i: (0, 0))],
        out_specs=pl.BlockSpec((r, c), lambda i: (0, 0)),
        compiler_params=pltpu.CompilerParams(
            dimension_semantics=("arbitrary",)
        ),
    )(w)


# --------------------------------------------------------------------------- #
# Kernel 2: batch-tiled minmax body (exp -> matmul -> log).
# --------------------------------------------------------------------------- #
def _minmax_kernel(x_ref, w_ref, o_ref, *, rho, inv_rho):
    # x_ref: (TB, in_dim) f32, w_ref: (out_pad, in_dim) f32 (already softmaxed)
    x_exp = jnp.exp(rho * x_ref[...])
    # Contract the last (lane) dim of both operands -> MXU, no weight transpose.
    y = lax.dot_general(
        x_exp,
        w_ref[...],
        dimension_numbers=(((1,), (1,)), ((), ())),
        preferred_element_type=jnp.float32,
    )
    # TODO(synk): a log-sum-exp formulation (subtract the per-row max of rho*x
    # before exp, add it back after the log) would be safer for unbounded
    # inputs; kept as-is to match the PyTorch module's behavior bit-for-bit.
    o_ref[...] = inv_rho * jnp.log(y + 1e-8)


def _pick_tb(b_pad, in_dim, out_pad, budget_bytes=24 * 1024 * 1024):
    # VMEM budget: 2x double-buffered x tile + 2x double-buffered out tile
    #              + one resident (softmaxed, padded) weight block, all f32.
    w_bytes = out_pad * in_dim * 4
    per_row = 2 * 4 * (in_dim + out_pad)
    tb = (budget_bytes - w_bytes) // per_row
    tb = int(max(8, min(tb, 2048, b_pad)))
    return max(8, (tb // 8) * 8)


def minmax_forward(x, weight, rho):
    """x: (B, input_dim) f32, weight: (output_dim, input_dim) f32, rho: float."""
    B, in_dim = x.shape
    out_dim, in_dim_w = weight.shape
    assert in_dim == in_dim_w, (
        f"Wrong Input Features. Please use tensor with {in_dim_w} Input Features"
    )

    # ---- pad output rows to a lane-dense multiple of 128 --------------------
    out_pad = _round_up(out_dim, 128)
    # Padded rows (zeros) just softmax to a uniform distribution; those output
    # columns are sliced away below, so they never affect the real result.
    w_padded = jnp.pad(weight.astype(jnp.float32),
                       ((0, out_pad - out_dim), (0, 0)))

    # ---- softmax over input_dim, computed once in its own kernel ------------
    w_soft = _softmax_rows(w_padded)

    # ---- batch tiling --------------------------------------------------------
    tb = _pick_tb(_round_up(B, 8), in_dim, out_pad)
    b_pad = _round_up(B, tb)
    # Zero-padded rows are harmless: exp(0)=1, sum(softmax)=1 -> log(1+eps)/rho,
    # and they are sliced away before returning.
    x_padded = jnp.pad(x.astype(jnp.float32), ((0, b_pad - B), (0, 0)))
    grid = (b_pad // tb,)

    kernel = functools.partial(
        _minmax_kernel, rho=float(rho), inv_rho=1.0 / float(rho)
    )

    cost = pl.CostEstimate(
        flops=2 * b_pad * in_dim * out_pad,
        transcendentals=b_pad * in_dim + b_pad * out_pad,
        bytes_accessed=4 * (b_pad * in_dim + out_pad * in_dim + b_pad * out_pad),
    )

    out_padded = pl.pallas_call(
        kernel,
        out_shape=jax.ShapeDtypeStruct((b_pad, out_pad), jnp.float32),
        grid=grid,
        in_specs=[
            pl.BlockSpec((tb, in_dim), lambda i: (i, 0)),
            pl.BlockSpec((out_pad, in_dim), lambda i: (0, 0)),  # resident weight
        ],
        out_specs=pl.BlockSpec((tb, out_pad), lambda i: (i, 0)),
        compiler_params=pltpu.CompilerParams(
            dimension_semantics=("parallel",),      # megacore sharding on v7x
            vmem_limit_bytes=32 * 1024 * 1024,      # safe on v5e/v6e/v7x
        ),
        cost_estimate=cost,
    )(x_padded, w_soft)

    return out_padded[:B, :out_dim]


def minmax_reference(x, weight, rho):
    """Pure-JAX reference mirroring the PyTorch forward."""
    x_exp = jnp.exp(rho * x)
    w_soft = jax.nn.softmax(weight, axis=1)
    y = x_exp @ w_soft.T
    return (1.0 / rho) * jnp.log(y + 1e-8)


if __name__ == "__main__":
    # Module config (small, consistent with the Linear-like forward)
    input_dim = 32
    output_dim = 16
    rho = 4.0
    batch = 8

    # Deterministic parameter init per __init__: weight = ones(output_dim, input_dim)
    weight = jnp.ones((output_dim, input_dim), dtype=jnp.float32)

    # Deterministic example input
    key = jax.random.PRNGKey(0)
    x = jax.random.normal(key, (batch, input_dim), dtype=jnp.float32)

    out = minmax_forward(x, weight, rho)
    out = jax.block_until_ready(out)

    ref = minmax_reference(x, weight, rho)
    assert out.shape == (batch, output_dim)
    assert jnp.allclose(out, ref, atol=1e-5, rtol=1e-5), (
        f"max abs err {jnp.max(jnp.abs(out - ref))}"
    )

    print("KERNEL_OK")
</pallas_src>

<mosaic_0001>
module attributes {stable_mosaic.version = 11 : i64} {
  func.func @_softmax_rows_kernel(%arg0: i32, %arg1: memref<128x32xf32, #tpu.memory_space<vmem>>, %arg2: memref<128x32xf32, #tpu.memory_space<vmem>>) attributes {dimension_semantics = [#tpu.dimension_semantics<arbitrary>], iteration_bounds = array<i64: 1>, scalar_prefetch = 0 : i64, scratch_operands = 0 : i64, tpu.core_type = #tpu.core_type<tc>, window_params = [{pipeline_mode = #tpu.pipeline_mode<synchronous>, transform_indices = @transform_0, window_bounds = array<i64: 128, 32>}, {pipeline_mode = #tpu.pipeline_mode<synchronous>, transform_indices = @transform_1, window_bounds = array<i64: 128, 32>}]} {
    %c0 = arith.constant 0 : index
    %c0_0 = arith.constant 0 : index
    %0 = vector.load %arg1[%c0, %c0_0] : memref<128x32xf32, #tpu.memory_space<vmem>>, vector<128x32xf32>
    %cst = arith.constant dense<0xFF800000> : vector<128xf32>
    %1 = vector.multi_reduction <maximumf>, %0, %cst [1] : vector<128x32xf32> to vector<128xf32>
    %2 = vector.shape_cast %1 : vector<128xf32> to vector<128x1xf32>
    %3 = vector.broadcast %2 : vector<128x1xf32> to vector<128x32xf32>
    %4 = arith.subf %0, %3 : vector<128x32xf32>
    %5 = math.exp %4 : vector<128x32xf32>
    %cst_1 = arith.constant dense<0.000000e+00> : vector<128xf32>
    %6 = vector.multi_reduction <add>, %5, %cst_1 [1] : vector<128x32xf32> to vector<128xf32>
    %7 = vector.shape_cast %6 : vector<128xf32> to vector<128x1xf32>
    %8 = vector.broadcast %7 : vector<128x1xf32> to vector<128x32xf32>
    %9 = arith.divf %5, %8 : vector<128x32xf32>
    %c0_2 = arith.constant 0 : index
    %c0_3 = arith.constant 0 : index
    %10 = vector.load %arg2[%c0_2, %c0_3] : memref<128x32xf32, #tpu.memory_space<vmem>>, vector<128x32xf32>
    tpu.vector_store %arg2[%c0_2, %c0_3], %9 {strides = array<i32>} : memref<128x32xf32, #tpu.memory_space<vmem>>, vector<128x32xf32>,
    return
  }
  func.func @transform_0(%arg0: i32) -> (i32, i32) {
    %c0_i32 = arith.constant 0 : i32
    %c0_i32_0 = arith.constant 0 : i32
    %c0_i32_1 = arith.constant 0 : i32
    return %c0_i32, %c0_i32_0 : i32, i32
  }
  func.func @transform_1(%arg0: i32) -> (i32, i32) {
    %c0_i32 = arith.constant 0 : i32
    %c0_i32_0 = arith.constant 0 : i32
    %c0_i32_1 = arith.constant 0 : i32
    return %c0_i32, %c0_i32_0 : i32, i32
  }
}

</mosaic_0001>

<llo_original>
// kernel: tpu_custom_call.1
$region0: #{tpu_custom_call.1}
  #allocation0 [shape = 'u32[]', space=smem, size = 0x4, offset = 0x4, fixed_abs, tag = 'smem constant byte address 0x4 - core index']
  #allocation1 [shape = 'u32[144,128]{1,0:T(1,128)}', space=vmem, size = 0x12000, scoped, tag = 'internal scratch']
  %s0 = inlined_call_operand.vmem [shape: f32[128,32], index: 0, kind: input, shape index: {}]
  %s1 = inlined_call_operand.vmem [shape: f32[128,32], index: 1, kind: output, shape index: {}]
  %s2 = sld [smem:[#allocation0]]
  $region14: #{tpu_custom_call.1} parent=0
    _
  %s4 = ssub.s32 1, %s2
  %s5 = scalar_select 0, %s4, %s2
  // Predicated region
  $region2: #{tpu_custom_call.1} parent=0 // pred_check
    _
  $region3: #{tpu_custom_call.1} parent=0 // pred_check_branch
    %7 = sbr.rel (0) target = $region5
  $region4: #{tpu_custom_call.1} parent=0 // pred_region
    _
  $region5: #{tpu_custom_call.1} parent=0 // pred_fallthru
    _
  %v8 = vld [vmem:[%s0] sm:$0xff]
  %v9 = vld [vmem:[%s0 + $0x8] sm:$0xff]
  %v10 = vld [vmem:[%s0 + $0x10] sm:$0xff]
  %v11 = vld [vmem:[%s0 + $0x18] sm:$0xff]
  %v12 = vld [vmem:[%s0 + $0x20] sm:$0xff]
  %v13 = vld [vmem:[%s0 + $0x28] sm:$0xff]
  %v14 = vld [vmem:[%s0 + $0x30] sm:$0xff]
  %v15 = vld [vmem:[%s0 + $0x38] sm:$0xff]
  %v16 = vld [vmem:[%s0 + $0x40] sm:$0xff]
  %v17 = vld [vmem:[%s0 + $0x48] sm:$0xff]
  %v18 = vld [vmem:[%s0 + $0x50] sm:$0xff]
  %v19 = vld [vmem:[%s0 + $0x58] sm:$0xff]
  %v20 = vld [vmem:[%s0 + $0x60] sm:$0xff]
  %v21 = vld [vmem:[%s0 + $0x68] sm:$0xff]
  %v22 = vld [vmem:[%s0 + $0x70] sm:$0xff]
  %v23 = vld [vmem:[%s0 + $0x78] sm:$0xff]
  %vm24 = vcmask 261120
  %v25 = vsel %vm24, %v8, -inf
  %26 = vmax.xlane.f32.xlu0 %v25
  %v27 = vpop.xlane.xlu0 %26
  %v28 = vsel %vm24, %v9, -inf
  %29 = vmax.xlane.f32.xlu0 %v28
  %v30 = vpop.xlane.xlu0 %29
  %v31 = vsel %vm24, %v10, -inf
  %32 = vmax.xlane.f32.xlu0 %v31
  %v33 = vpop.xlane.xlu0 %32
  %v34 = vsel %vm24, %v11, -inf
  %35 = vmax.xlane.f32.xlu0 %v34
  %v36 = vpop.xlane.xlu0 %35
  %v37 = vsel %vm24, %v12, -inf
  %38 = vmax.xlane.f32.xlu0 %v37
  %v39 = vpop.xlane.xlu0 %38
  %v40 = vsel %vm24, %v13, -inf
  %41 = vmax.xlane.f32.xlu0 %v40
  %v42 = vpop.xlane.xlu0 %41
  %v43 = vsel %vm24, %v14, -inf
  %44 = vmax.xlane.f32.xlu0 %v43
  %v45 = vpop.xlane.xlu0 %44
  %v46 = vsel %vm24, %v15, -inf
  %47 = vmax.xlane.f32.xlu0 %v46
  %v48 = vpop.xlane.xlu0 %47
  %v49 = vsel %vm24, %v16, -inf
  %50 = vmax.xlane.f32.xlu0 %v49
  %v51 = vpop.xlane.xlu0 %50
  %v52 = vsel %vm24, %v17, -inf
  %53 = vmax.xlane.f32.xlu0 %v52
  %v54 = vpop.xlane.xlu0 %53
  %v55 = vsel %vm24, %v18, -inf
  %56 = vmax.xlane.f32.xlu0 %v55
  %v57 = vpop.xlane.xlu0 %56
  %v58 = vsel %vm24, %v19, -inf
  %59 = vmax.xlane.f32.xlu0 %v58
  %v60 = vpop.xlane.xlu0 %59
  %v61 = vsel %vm24, %v20, -inf
  %62 = vmax.xlane.f32.xlu0 %v61
  %v63 = vpop.xlane.xlu0 %62
  %v64 = vsel %vm24, %v21, -inf
  %65 = vmax.xlane.f32.xlu0 %v64
  %v66 = vpop.xlane.xlu0 %65
  %v67 = vsel %vm24, %v22, -inf
  %68 = vmax.xlane.f32.xlu0 %v67
  %v69 = vpop.xlane.xlu0 %68
  %v70 = vsel %vm24, %v23, -inf
  %71 = vmax.xlane.f32.xlu0 %v70
  %v72 = vpop.xlane.xlu0 %71
  %v73 = vsub.f32 %v8, %v27
  %v74 = vsub.f32 %v9, %v30
  %v75 = vsub.f32 %v10, %v33
  %v76 = vsub.f32 %v11, %v36
  %v77 = vsub.f32 %v12, %v39
  %v78 = vsub.f32 %v13, %v42
  %v79 = vsub.f32 %v14, %v45
  %v80 = vsub.f32 %v15, %v48
  %v81 = vsub.f32 %v16, %v51
  %v82 = vsub.f32 %v17, %v54
  %v83 = vsub.f32 %v18, %v57
  %v84 = vsub.f32 %v19, %v60
  %v85 = vsub.f32 %v20, %v63
  %v86 = vsub.f32 %v21, %v66
  %v87 = vsub.f32 %v22, %v69
  %v88 = vsub.f32 %v23, %v72
  %v89 = vmul.f32 %v73, 1.442695
  %v90 = vpow.pop %v89
  %v91 = vmul.f32 %v74, 1.442695
  %v92 = vpow.pop %v91
  %v93 = vmul.f32 %v75, 1.442695
  %v94 = vpow.pop %v93
  %v95 = vmul.f32 %v76, 1.442695
  %v96 = vpow.pop %v95
  %v97 = vmul.f32 %v77, 1.442695
  %v98 = vpow.pop %v97
  %v99 = vmul.f32 %v78, 1.442695
  %v100 = vpow.pop %v99
  %v101 = vmul.f32 %v79, 1.442695
  %v102 = vpow.pop %v101
  %v103 = vmul.f32 %v80, 1.442695
  %v104 = vpow.pop %v103
  %v105 = vmul.f32 %v81, 1.442695
  %v106 = vpow.pop %v105
  %v107 = vmul.f32 %v82, 1.442695
  %v108 = vpow.pop %v107
  %v109 = vmul.f32 %v83, 1.442695
  %v110 = vpow.pop %v109
  %v111 = vmul.f32 %v84, 1.442695
  %v112 = vpow.pop %v111
  %v113 = vmul.f32 %v85, 1.442695
  %v114 = vpow.pop %v113
  %v115 = vmul.f32 %v86, 1.442695
  %v116 = vpow.pop %v115
  %v117 = vmul.f32 %v87, 1.442695
  %v118 = vpow.pop %v117
  %v119 = vmul.f32 %v88, 1.442695
  %v120 = vpow.pop %v119
  %v121 = vsel %vm24, %v90, 0.0
  %122 = vadd.xlane.f32.xlu0 %v121
  %v123 = vpop.xlane.xlu0 %122
  %v124 = vsel %vm24, %v92, 0.0
  %125 = vadd.xlane.f32.xlu0 %v124
  %v126 = vpop.xlane.xlu0 %125
  %v127 = vsel %vm24, %v94, 0.0
  %128 = vadd.xlane.f32.xlu0 %v127
  %v129 = vpop.xlane.xlu0 %128
  %v130 = vsel %vm24, %v96, 0.0
  %131 = vadd.xlane.f32.xlu0 %v130
  %v132 = vpop.xlane.xlu0 %131
  %v133 = vsel %vm24, %v98, 0.0
  %134 = vadd.xlane.f32.xlu0 %v133
  %v135 = vpop.xlane.xlu0 %134
  %v136 = vsel %vm24, %v100, 0.0
  %137 = vadd.xlane.f32.xlu0 %v136
  %v138 = vpop.xlane.xlu0 %137
  %v139 = vsel %vm24, %v102, 0.0
  %140 = vadd.xlane.f32.xlu0 %v139
  %v141 = vpop.xlane.xlu0 %140
  %v142 = vsel %vm24, %v104, 0.0
  %143 = vadd.xlane.f32.xlu0 %v142
  %v144 = vpop.xlane.xlu0 %143
  %v145 = vsel %vm24, %v106, 0.0
  %146 = vadd.xlane.f32.xlu0 %v145
  %v147 = vpop.xlane.xlu0 %146
  %v148 = vsel %vm24, %v108, 0.0
  %149 = vadd.xlane.f32.xlu0 %v148
  %v150 = vpop.xlane.xlu0 %149
  %v151 = vsel %vm24, %v110, 0.0
  %152 = vadd.xlane.f32.xlu0 %v151
  %v153 = vpop.xlane.xlu0 %152
  %v154 = vsel %vm24, %v112, 0.0
  %155 = vadd.xlane.f32.xlu0 %v154
  %v156 = vpop.xlane.xlu0 %155
  %v157 = vsel %vm24, %v114, 0.0
  %158 = vadd.xlane.f32.xlu0 %v157
  %v159 = vpop.xlane.xlu0 %158
  %v160 = vsel %vm24, %v116, 0.0
  %161 = vadd.xlane.f32.xlu0 %v160
  %v162 = vpop.xlane.xlu0 %161
  %v163 = vsel %vm24, %v118, 0.0
  %164 = vadd.xlane.f32.xlu0 %v163
  %v165 = vpop.xlane.xlu0 %164
  %v166 = vsel %vm24, %v120, 0.0
  %167 = vadd.xlane.f32.xlu0 %v166
  %v168 = vpop.xlane.xlu0 %167
  %v169 = vrcp.pop %v123
  %v170 = vmul.f32 %v90, %v169
  %v171 = vrcp.pop %v126
  %v172 = vmul.f32 %v92, %v171
  %v173 = vrcp.pop %v129
  %v174 = vmul.f32 %v94, %v173
  %v175 = vrcp.pop %v132
  %v176 = vmul.f32 %v96, %v175
  %v177 = vrcp.pop %v135
  %v178 = vmul.f32 %v98, %v177
  %v179 = vrcp.pop %v138
  %v180 = vmul.f32 %v100, %v179
  %v181 = vrcp.pop %v141
  %v182 = vmul.f32 %v102, %v181
  %v183 = vrcp.pop %v144
  %v184 = vmul.f32 %v104, %v183
  %v185 = vrcp.pop %v147
  %v186 = vmul.f32 %v106, %v185
  %v187 = vrcp.pop %v150
  %v188 = vmul.f32 %v108, %v187
  %v189 = vrcp.pop %v153
  %v190 = vmul.f32 %v110, %v189
  %v191 = vrcp.pop %v156
  %v192 = vmul.f32 %v112, %v191
  %v193 = vrcp.pop %v159
  %v194 = vmul.f32 %v114, %v193
  %v195 = vrcp.pop %v162
  %v196 = vmul.f32 %v116, %v195
  %v197 = vrcp.pop %v165
  %v198 = vmul.f32 %v118, %v197
  %v199 = vrcp.pop %v168
  %v200 = vmul.f32 %v120, %v199
  %201 = vst.msk [vmem:[%s1] sm:$0xff] %vm24, %v170
  %202 = vst.msk [vmem:[%s1 + $0x8] sm:$0xff] %vm24, %v172
  %203 = vst.msk [vmem:[%s1 + $0x10] sm:$0xff] %vm24, %v174
  %204 = vst.msk [vmem:[%s1 + $0x18] sm:$0xff] %vm24, %v176
  %205 = vst.msk [vmem:[%s1 + $0x20] sm:$0xff] %vm24, %v178
  %206 = vst.msk [vmem:[%s1 + $0x28] sm:$0xff] %vm24, %v180
  %207 = vst.msk [vmem:[%s1 + $0x30] sm:$0xff] %vm24, %v182
  %208 = vst.msk [vmem:[%s1 + $0x38] sm:$0xff] %vm24, %v184
  %209 = vst.msk [vmem:[%s1 + $0x40] sm:$0xff] %vm24, %v186
  %210 = vst.msk [vmem:[%s1 + $0x48] sm:$0xff] %vm24, %v188
  %211 = vst.msk [vmem:[%s1 + $0x50] sm:$0xff] %vm24, %v190
  %212 = vst.msk [vmem:[%s1 + $0x58] sm:$0xff] %vm24, %v192
  %213 = vst.msk [vmem:[%s1 + $0x60] sm:$0xff] %vm24, %v194
  %214 = vst.msk [vmem:[%s1 + $0x68] sm:$0xff] %vm24, %v196
  %215 = vst.msk [vmem:[%s1 + $0x70] sm:$0xff] %vm24, %v198
  %216 = vst.msk [vmem:[%s1 + $0x78] sm:$0xff] %vm24, %v200
  // Predicated region
  $region6: #{tpu_custom_call.1} parent=0 // pred_check
    _
  $region7: #{tpu_custom_call.1} parent=0 // pred_check_branch
    %218 = sbr.rel (0) target = $region9
  $region8: #{tpu_custom_call.1} parent=0 // pred_region
    _
  $region9: #{tpu_custom_call.1} parent=0 // pred_fallthru
    _
  // Predicated region
  $region10: #{tpu_custom_call.1} parent=0 // pred_check
    _
  $region11: #{tpu_custom_call.1} parent=0 // pred_check_branch
    %220 = sbr.rel (0) target = $region13
  $region12: #{tpu_custom_call.1} parent=0 // pred_region
    _
  $region13: #{tpu_custom_call.1} parent=0 // pred_fallthru
    _

</llo_original>
